<compile_context>
chip_gen: v5e
topology: v5e:2x2
jax: 0.10.0
libtpu: 0.0.40
codegen_flags: <defaults>
</compile_context>

<pallas_src>
import math

import jax
import jax.numpy as jnp
from jax.experimental import pallas as pl
from jax.experimental.pallas import tpu as pltpu

# ---- model hyper-params (small, consistent with the module's asserts) ----
B = 2          # batch
T = 8          # sequence length
D_MODEL = 32   # d_model
N_HEAD = 4     # n_head
HD = D_MODEL // N_HEAD  # head dim = 8


def self_attention_kernel(x_ref, w_attn_ref, w_proj_ref, o_ref):
    """One batch element per grid step.

    x_ref:      (1, T, C)   activations for this batch element
    w_attn_ref: (C, 3C)     c_attn weight, pre-transposed to (in, out); cols = [q | k | v]
    w_proj_ref: (C, C)      c_proj weight, pre-transposed to (in, out)
    o_ref:      (1, T, C)
    """
    _, t, c = x_ref.shape
    h = N_HEAD
    hd = c // h
    scale = 1.0 / math.sqrt(hd)

    x = x_ref[0]                      # (T, C)
    w_attn = w_attn_ref[...]          # (C, 3C)
    w_proj = w_proj_ref[...]          # (C, C)

    # Fused QKV projection: one lane-dense 2-D MXU matmul, K = C, output width 3C.
    qkv = jnp.dot(x, w_attn, preferred_element_type=jnp.float32)   # (T, 3C)

    # Head split is pure layout plumbing (static lane slices + stack on a new
    # leading batch axis); all matmuls below stay fused / head-batched.
    def split_heads(base):
        return jnp.stack(
            [qkv[:, base + i * hd: base + (i + 1) * hd] for i in range(h)], axis=0)

    q = split_heads(0)        # (H, T, hd)
    k = split_heads(c)        # (H, T, hd)
    v = split_heads(2 * c)    # (H, T, hd)

    # Head-batched scores + numerically-stable softmax (f32 elementwise).
    s = jnp.einsum("hqd,hkd->hqk", q, k,
                   preferred_element_type=jnp.float32) * scale     # (H, T, T)
    s = s - jnp.max(s, axis=-1, keepdims=True)
    p = jnp.exp(s)
    # exact reciprocal keeps the tight tolerance; use approx=True when scaling up
    p = p * pl.reciprocal(jnp.sum(p, axis=-1, keepdims=True), approx=False)

    y = jnp.einsum("hqk,hkd->hqd", p, v,
                   preferred_element_type=jnp.float32)             # (H, T, hd)

    # Concatenate heads along lanes, then one fused output projection
    # (equivalent to "concat heads then c_proj"; folds the per-head sum into the MXU).
    y_cat = jnp.concatenate([y[i] for i in range(h)], axis=-1)     # (T, C)
    out = jnp.dot(y_cat, w_proj, preferred_element_type=jnp.float32)  # (T, C)

    # resid_dropout / attn_dropout are identity at p = 0.0 (eval); single store.
    o_ref[0] = out.astype(o_ref.dtype)


def self_attention(x, w_attn, w_proj):
    """x: (B, T, C); w_attn: (C, 3C); w_proj: (C, C). Returns (B, T, C)."""
    bx, tx, cx = x.shape
    return pl.pallas_call(
        self_attention_kernel,
        out_shape=jax.ShapeDtypeStruct((bx, tx, cx), x.dtype),
        grid=(bx,),
        in_specs=[
            pl.BlockSpec((1, tx, cx), lambda b: (b, 0, 0)),
            pl.BlockSpec((cx, 3 * cx), lambda b: (0, 0)),   # constant block: fetched once per core
            pl.BlockSpec((cx, cx), lambda b: (0, 0)),
        ],
        out_specs=pl.BlockSpec((1, tx, cx), lambda b: (b, 0, 0)),
        compiler_params=pltpu.CompilerParams(
            dimension_semantics=("parallel",)),   # megacore sharding on v7x
    )(x, w_attn, w_proj)


def self_attention_ref(x, w_attn, w_proj):
    """Pure-JAX reference mirroring the PyTorch forward (eval mode, no mask, non-causal)."""
    bx, tx, cx = x.shape
    qkv = x @ w_attn                                  # (B, T, 3C)
    q, k, v = jnp.split(qkv, 3, axis=-1)

    def heads(t):
        return t.reshape(bx, tx, N_HEAD, HD).transpose(0, 2, 1, 3)   # (B, H, T, hd)

    q, k, v = heads(q), heads(k), heads(v)
    att = jnp.einsum("bhqd,bhkd->bhqk", q, k) / math.sqrt(HD)
    att = jax.nn.softmax(att, axis=-1)
    y = jnp.einsum("bhqk,bhkd->bhqd", att, v)         # (B, H, T, hd)
    y = y.transpose(0, 2, 1, 3).reshape(bx, tx, cx)
    return y @ w_proj


if __name__ == "__main__":
    key = jax.random.PRNGKey(0)
    kx, ka, kp = jax.random.split(key, 3)

    x = jax.random.normal(kx, (B, T, D_MODEL), dtype=jnp.float32)
    # deterministic synthetic weights for nn.Linear(C, 3C, bias=False) /
    # nn.Linear(C, C, bias=False), stored pre-transposed as (in, out)
    w_attn = jax.random.normal(ka, (D_MODEL, 3 * D_MODEL), dtype=jnp.float32) / math.sqrt(D_MODEL)
    w_proj = jax.random.normal(kp, (D_MODEL, D_MODEL), dtype=jnp.float32) / math.sqrt(D_MODEL)

    out = self_attention(x, w_attn, w_proj)
    out = jax.block_until_ready(out)

    ref = self_attention_ref(x, w_attn, w_proj)
    assert out.shape == (B, T, D_MODEL)
    assert jnp.allclose(out, ref, atol=2e-4, rtol=2e-4), "mismatch vs pure-JAX reference"
    print("KERNEL_OK")
</pallas_src>

<mosaic_0001>
module attributes {stable_mosaic.version = 11 : i64} {
  func.func @self_attention_kernel(%arg0: i32, %arg1: memref<1x8x32xf32, #tpu.memory_space<vmem>>, %arg2: memref<32x96xf32, #tpu.memory_space<vmem>>, %arg3: memref<32x32xf32, #tpu.memory_space<vmem>>, %arg4: memref<1x8x32xf32, #tpu.memory_space<vmem>>) attributes {dimension_semantics = [#tpu.dimension_semantics<parallel>], iteration_bounds = array<i64: 2>, scalar_prefetch = 0 : i64, scratch_operands = 0 : i64, tpu.core_type = #tpu.core_type<tc>, window_params = [{transform_indices = @transform_0, window_bounds = array<i64: 1, 8, 32>}, {pipeline_mode = #tpu.pipeline_mode<synchronous>, transform_indices = @transform_1, window_bounds = array<i64: 32, 96>}, {pipeline_mode = #tpu.pipeline_mode<synchronous>, transform_indices = @transform_2, window_bounds = array<i64: 32, 32>}, {transform_indices = @transform_3, window_bounds = array<i64: 1, 8, 32>}]} {
    %c0 = arith.constant 0 : index
    %c0_0 = arith.constant 0 : index
    %c0_1 = arith.constant 0 : index
    %0 = vector.load %arg1[%c0, %c0_0, %c0_1] : memref<1x8x32xf32, #tpu.memory_space<vmem>>, vector<1x8x32xf32>
    %1 = vector.shape_cast %0 : vector<1x8x32xf32> to vector<8x32xf32>
    %c0_2 = arith.constant 0 : index
    %c0_3 = arith.constant 0 : index
    %2 = vector.load %arg2[%c0_2, %c0_3] : memref<32x96xf32, #tpu.memory_space<vmem>>, vector<32x96xf32>
    %c0_4 = arith.constant 0 : index
    %c0_5 = arith.constant 0 : index
    %3 = vector.load %arg3[%c0_4, %c0_5] : memref<32x32xf32, #tpu.memory_space<vmem>>, vector<32x32xf32>
    %cst = arith.constant dense<0.000000e+00> : vector<8x96xf32>
    %4 = tpu.matmul %1, %2, %cst {dimension_numbers = #tpu.dot_dimension_numbers<[1], [0], [0], [1], [0, 0, 1, 1], [], []>} : vector<8x32xf32>, vector<32x96xf32>, vector<8x96xf32> -> vector<8x96xf32>
    %5 = vector.extract_strided_slice %4 {offsets = [0, 0], sizes = [8, 8], strides = [1, 1]} : vector<8x96xf32> to vector<8x8xf32>
    %6 = vector.extract_strided_slice %4 {offsets = [0, 8], sizes = [8, 8], strides = [1, 1]} : vector<8x96xf32> to vector<8x8xf32>
    %7 = vector.extract_strided_slice %4 {offsets = [0, 16], sizes = [8, 8], strides = [1, 1]} : vector<8x96xf32> to vector<8x8xf32>
    %8 = vector.extract_strided_slice %4 {offsets = [0, 24], sizes = [8, 8], strides = [1, 1]} : vector<8x96xf32> to vector<8x8xf32>
    %9 = vector.shape_cast %5 : vector<8x8xf32> to vector<1x8x8xf32>
    %10 = vector.shape_cast %6 : vector<8x8xf32> to vector<1x8x8xf32>
    %11 = vector.shape_cast %7 : vector<8x8xf32> to vector<1x8x8xf32>
    %12 = vector.shape_cast %8 : vector<8x8xf32> to vector<1x8x8xf32>
    %13 = tpu.concatenate %9, %10, %11, %12 in 0 : vector<1x8x8xf32>, vector<1x8x8xf32>, vector<1x8x8xf32>, vector<1x8x8xf32> -> vector<4x8x8xf32>
    %14 = vector.extract_strided_slice %4 {offsets = [0, 32], sizes = [8, 8], strides = [1, 1]} : vector<8x96xf32> to vector<8x8xf32>
    %15 = vector.extract_strided_slice %4 {offsets = [0, 40], sizes = [8, 8], strides = [1, 1]} : vector<8x96xf32> to vector<8x8xf32>
    %16 = vector.extract_strided_slice %4 {offsets = [0, 48], sizes = [8, 8], strides = [1, 1]} : vector<8x96xf32> to vector<8x8xf32>
    %17 = vector.extract_strided_slice %4 {offsets = [0, 56], sizes = [8, 8], strides = [1, 1]} : vector<8x96xf32> to vector<8x8xf32>
    %18 = vector.shape_cast %14 : vector<8x8xf32> to vector<1x8x8xf32>
    %19 = vector.shape_cast %15 : vector<8x8xf32> to vector<1x8x8xf32>
    %20 = vector.shape_cast %16 : vector<8x8xf32> to vector<1x8x8xf32>
    %21 = vector.shape_cast %17 : vector<8x8xf32> to vector<1x8x8xf32>
    %22 = tpu.concatenate %18, %19, %20, %21 in 0 : vector<1x8x8xf32>, vector<1x8x8xf32>, vector<1x8x8xf32>, vector<1x8x8xf32> -> vector<4x8x8xf32>
    %23 = vector.extract_strided_slice %4 {offsets = [0, 64], sizes = [8, 8], strides = [1, 1]} : vector<8x96xf32> to vector<8x8xf32>
    %24 = vector.extract_strided_slice %4 {offsets = [0, 72], sizes = [8, 8], strides = [1, 1]} : vector<8x96xf32> to vector<8x8xf32>
    %25 = vector.extract_strided_slice %4 {offsets = [0, 80], sizes = [8, 8], strides = [1, 1]} : vector<8x96xf32> to vector<8x8xf32>
    %26 = vector.extract_strided_slice %4 {offsets = [0, 88], sizes = [8, 8], strides = [1, 1]} : vector<8x96xf32> to vector<8x8xf32>
    %27 = vector.shape_cast %23 : vector<8x8xf32> to vector<1x8x8xf32>
    %28 = vector.shape_cast %24 : vector<8x8xf32> to vector<1x8x8xf32>
    %29 = vector.shape_cast %25 : vector<8x8xf32> to vector<1x8x8xf32>
    %30 = vector.shape_cast %26 : vector<8x8xf32> to vector<1x8x8xf32>
    %31 = tpu.concatenate %27, %28, %29, %30 in 0 : vector<1x8x8xf32>, vector<1x8x8xf32>, vector<1x8x8xf32>, vector<1x8x8xf32> -> vector<4x8x8xf32>
    "tpu.trace_start"() <{level = 10 : i32, message = "hqd,hkd->hqk"}> : () -> ()
    %cst_6 = arith.constant dense<0.000000e+00> : vector<4x8x8xf32>
    %32 = tpu.matmul %13, %22, %cst_6 {dimension_numbers = #tpu.dot_dimension_numbers<[2], [2], [1], [1], [0, 0, 0, 1, 1, 1], [0], [0]>} : vector<4x8x8xf32>, vector<4x8x8xf32>, vector<4x8x8xf32> -> vector<4x8x8xf32>
    "tpu.trace_stop"() : () -> ()
    %cst_7 = arith.constant 0.353553385 : f32
    %33 = vector.broadcast %cst_7 : f32 to vector<4x8x8xf32>
    %34 = arith.mulf %32, %33 : vector<4x8x8xf32>
    %cst_8 = arith.constant dense<0xFF800000> : vector<4x8xf32>
    %35 = vector.multi_reduction <maximumf>, %34, %cst_8 [2] : vector<4x8x8xf32> to vector<4x8xf32>
    %36 = vector.shape_cast %35 : vector<4x8xf32> to vector<4x8x1xf32>
    %37 = vector.broadcast %36 : vector<4x8x1xf32> to vector<4x8x8xf32>
    %38 = arith.subf %34, %37 : vector<4x8x8xf32>
    %39 = math.exp %38 : vector<4x8x8xf32>
    %cst_9 = arith.constant dense<0.000000e+00> : vector<4x8xf32>
    %40 = vector.multi_reduction <add>, %39, %cst_9 [2] : vector<4x8x8xf32> to vector<4x8xf32>
    %41 = vector.shape_cast %40 : vector<4x8xf32> to vector<4x8x1xf32>
    %42 = tpu.reciprocal %41 : vector<4x8x1xf32> -> vector<4x8x1xf32>
    %43 = vector.broadcast %42 : vector<4x8x1xf32> to vector<4x8x8xf32>
    %44 = arith.mulf %39, %43 : vector<4x8x8xf32>
    "tpu.trace_start"() <{level = 10 : i32, message = "hqk,hkd->hqd"}> : () -> ()
    %cst_10 = arith.constant dense<0.000000e+00> : vector<4x8x8xf32>
    %45 = tpu.matmul %44, %31, %cst_10 {dimension_numbers = #tpu.dot_dimension_numbers<[2], [1], [1], [2], [0, 0, 0, 1, 1, 2], [0], [0]>} : vector<4x8x8xf32>, vector<4x8x8xf32>, vector<4x8x8xf32> -> vector<4x8x8xf32>
    "tpu.trace_stop"() : () -> ()
    %46 = vector.extract_strided_slice %45 {offsets = [0, 0, 0], sizes = [1, 8, 8], strides = [1, 1, 1]} : vector<4x8x8xf32> to vector<1x8x8xf32>
    %47 = vector.shape_cast %46 : vector<1x8x8xf32> to vector<8x8xf32>
    %48 = vector.extract_strided_slice %45 {offsets = [1, 0, 0], sizes = [1, 8, 8], strides = [1, 1, 1]} : vector<4x8x8xf32> to vector<1x8x8xf32>
    %49 = vector.shape_cast %48 : vector<1x8x8xf32> to vector<8x8xf32>
    %50 = vector.extract_strided_slice %45 {offsets = [2, 0, 0], sizes = [1, 8, 8], strides = [1, 1, 1]} : vector<4x8x8xf32> to vector<1x8x8xf32>
    %51 = vector.shape_cast %50 : vector<1x8x8xf32> to vector<8x8xf32>
    %52 = vector.extract_strided_slice %45 {offsets = [3, 0, 0], sizes = [1, 8, 8], strides = [1, 1, 1]} : vector<4x8x8xf32> to vector<1x8x8xf32>
    %53 = vector.shape_cast %52 : vector<1x8x8xf32> to vector<8x8xf32>
    %54 = tpu.concatenate %47, %49, %51, %53 in 1 : vector<8x8xf32>, vector<8x8xf32>, vector<8x8xf32>, vector<8x8xf32> -> vector<8x32xf32>
    %cst_11 = arith.constant dense<0.000000e+00> : vector<8x32xf32>
    %55 = tpu.matmul %54, %3, %cst_11 {dimension_numbers = #tpu.dot_dimension_numbers<[1], [0], [0], [1], [0, 0, 1, 1], [], []>} : vector<8x32xf32>, vector<32x32xf32>, vector<8x32xf32> -> vector<8x32xf32>
    %c0_12 = arith.constant 0 : index
    %c0_13 = arith.constant 0 : index
    %c0_14 = arith.constant 0 : index
    %56 = vector.load %arg4[%c0_12, %c0_13, %c0_14] : memref<1x8x32xf32, #tpu.memory_space<vmem>>, vector<1x8x32xf32>
    %57 = vector.shape_cast %56 : vector<1x8x32xf32> to vector<8x32xf32>
    %58 = vector.shape_cast %55 : vector<8x32xf32> to vector<1x8x32xf32>
    tpu.vector_store %arg4[%c0_12, %c0_13, %c0_14], %58 {strides = array<i32>} : memref<1x8x32xf32, #tpu.memory_space<vmem>>, vector<1x8x32xf32>,
    return
  }
  func.func @transform_0(%arg0: i32) -> (i32, i32, i32) {
    %c0_i32 = arith.constant 0 : i32
    %c0_i32_0 = arith.constant 0 : i32
    %c0_i32_1 = arith.constant 0 : i32
    return %arg0, %c0_i32, %c0_i32_0 : i32, i32, i32
  }
  func.func @transform_1(%arg0: i32) -> (i32, i32) {
    %c0_i32 = arith.constant 0 : i32
    %c0_i32_0 = arith.constant 0 : i32
    %c0_i32_1 = arith.constant 0 : i32
    return %c0_i32, %c0_i32_0 : i32, i32
  }
  func.func @transform_2(%arg0: i32) -> (i32, i32) {
    %c0_i32 = arith.constant 0 : i32
    %c0_i32_0 = arith.constant 0 : i32
    %c0_i32_1 = arith.constant 0 : i32
    return %c0_i32, %c0_i32_0 : i32, i32
  }
  func.func @transform_3(%arg0: i32) -> (i32, i32, i32) {
    %c0_i32 = arith.constant 0 : i32
    %c0_i32_0 = arith.constant 0 : i32
    %c0_i32_1 = arith.constant 0 : i32
    return %arg0, %c0_i32, %c0_i32_0 : i32, i32, i32
  }
}

</mosaic_0001>

<llo_original>
// kernel: tpu_custom_call.1
$region0: #{tpu_custom_call.1}
  #allocation0 [shape = 'u32[]', space=smem, size = 0x4, offset = 0x4, fixed_abs, tag = 'smem constant byte address 0x4 - core index']
  #allocation1 [shape = 'u32[72,128]{1,0:T(1,128)}', space=vmem, size = 0x9000, scoped, tag = 'internal scratch']
  %s0 = inlined_call_operand.hbm [shape: f32[2,8,32], index: 0, kind: input, shape index: {}]
  %s1 = inlined_call_operand.hbm [shape: f32[32,96], index: 1, kind: input, shape index: {}]
  %s2 = inlined_call_operand.hbm [shape: f32[32,32], index: 2, kind: input, shape index: {}]
  %s3 = inlined_call_operand.hbm [shape: f32[2,8,32], index: 3, kind: output, shape index: {}]
  %s4 = sld [smem:[#allocation0]]
  $region57: #{tpu_custom_call.1} parent=0
    _
  %s6 = ssub.s32 1, %s4
  %s7 = scalar_select 0, %s6, %s4
  $region1: #{tpu_custom_call.1} parent=0
    #allocation2 [shape = 'u8[8192]{0}', space=vmem, size = 0x2000, scoped, tag = 'input window, operand 0']
    #allocation3 [shape = 's32[2]{0}', space=sflag, size = 0x8, scoped, tag = 'scoped memory for tpu_custom_call.1']
    #allocation4 [shape = 's32[2]{0}', space=sflag, size = 0x8, scoped, tag = 'scoped memory for tpu_custom_call.1']
    #allocation5 [shape = 'u8[16384]{0}', space=vmem, size = 0x4000, scoped, tag = 'input window, operand 1, single buffered']
    #allocation6 [shape = 's32[1]{0}', space=sflag, size = 0x4, scoped, tag = 'scoped memory for tpu_custom_call.1']
    #allocation7 [shape = 'u8[16384]{0}', space=vmem, size = 0x4000, scoped, tag = 'input window, operand 2, single buffered']
    #allocation8 [shape = 'u8[8192]{0}', space=vmem, size = 0x2000, scoped, tag = 'output window, operand 0']
    %8 = vsyncpa [#allocation3], 0
    %s9 = scalar_lea.sflag [#allocation3], 1
    %10 = vsyncpa %s9, 0
    %11 = vsyncpa [#allocation6], 0
    %12 = vsyncpa [#allocation4], 0
    %s13 = scalar_lea.sflag [#allocation4], 1
    %14 = vsyncpa %s13, 0
    loop: start=0, step=1, limit=4
    $region2: #{tpu_custom_call.1} parent=1 // loop_pre_header
      _
    $region3: #{tpu_custom_call.1} parent=1 // loop_header
      %s16 = sphi 0, %s20
      %p17 = scmp.ge.s32.totalorder %s16, 4
      %s26 = sphi 0, %s28
      %s29 = sphi 0, %s26
      %s30 = sphi 0, %s29
      %s46 = sphi 0, %s30
      %s50 = sphi 0, %s50
      %s52 = sphi 0, %s50
      %s53 = sphi 0, %s52
      %s67 = sphi 0, %s53
      %s71 = sphi 0, %s71
      %s73 = sphi 0, %s71
      %s74 = sphi 0, %s73
      %s88 = sphi 0, %s74
      %s94 = sphi 0, %s96
      %s97 = sphi 0, %s94
      %s98 = sphi 0, %s97
      %s114 = sphi 0, %s98
    $region4: #{tpu_custom_call.1} parent=1 // loop_header_branch
      %19 = sbr.rel (%p17) target = $region8
    $region5: #{tpu_custom_call.1} parent=1 // loop_body
      %s21 = ssub.s32 %s16, 1
      %s22 = ssub.s32 %s16, 2
      %s23 = sadd.s32 %s16, 1
      %s24 = ssub.s32 %s16, %s23
      %p25 = scmp.eq.s32.totalorder %s24, 0
      %s27 = sadd.s32 %s26, 1
      %s28 = scalar_select %p25, %s26, %s27
      %p31 = pneg %p25
      %p32 = scmp.eq.s32.totalorder %s16, 1
      %p33 = por %p31, %p32
      %p34 = scmp.ne.s32.totalorder %s26, %s29
      %p35 = scmp.eq.s32.totalorder %s16, 0
      %p36 = por %p34, %p35
      %p37 = scmp.ne.s32.totalorder %s26, %s29
      %p38 = scmp.eq.s32.totalorder %s21, 1
      %p39 = por %p37, %p38
      %p40 = scmp.ne.s32.totalorder %s29, %s30
      %p41 = scmp.eq.s32.totalorder %s21, 0
      %p42 = por %p40, %p41
      %p43 = scmp.ne.s32.totalorder %s29, %s30
      %p44 = scmp.eq.s32.totalorder %s22, 1
      %p45 = por %p43, %p44
      %p47 = scmp.ne.s32.totalorder %s30, %s46
      %p48 = scmp.eq.s32.totalorder %s22, 0
      %p49 = por %p47, %p48
      %s51 = sadd.s32 %s50, 1
      %p54 = scmp.eq.s32.totalorder %s16, 1
      %p55 = scmp.ne.s32.totalorder %s50, %s52
      %p56 = scmp.eq.s32.totalorder %s16, 0
      %p57 = por %p55, %p56
      %p58 = scmp.ne.s32.totalorder %s50, %s52
      %p59 = scmp.eq.s32.totalorder %s21, 1
      %p60 = por %p58, %p59
      %p61 = scmp.ne.s32.totalorder %s52, %s53
      %p62 = scmp.eq.s32.totalorder %s21, 0
      %p63 = por %p61, %p62
      %p64 = scmp.ne.s32.totalorder %s52, %s53
      %p65 = scmp.eq.s32.totalorder %s22, 1
      %p66 = por %p64, %p65
      %p68 = scmp.ne.s32.totalorder %s53, %s67
      %p69 = scmp.eq.s32.totalorder %s22, 0
      %p70 = por %p68, %p69
      %s72 = sadd.s32 %s71, 1
      %p75 = scmp.eq.s32.totalorder %s16, 1
      %p76 = scmp.ne.s32.totalorder %s71, %s73
      %p77 = scmp.eq.s32.totalorder %s16, 0
      %p78 = por %p76, %p77
      %p79 = scmp.ne.s32.totalorder %s71, %s73
      %p80 = scmp.eq.s32.totalorder %s21, 1
      %p81 = por %p79, %p80
      %p82 = scmp.ne.s32.totalorder %s73, %s74
      %p83 = scmp.eq.s32.totalorder %s21, 0
      %p84 = por %p82, %p83
      %p85 = scmp.ne.s32.totalorder %s73, %s74
      %p86 = scmp.eq.s32.totalorder %s22, 1
      %p87 = por %p85, %p86
      %p89 = scmp.ne.s32.totalorder %s74, %s88
      %p90 = scmp.eq.s32.totalorder %s22, 0
      %p91 = por %p89, %p90
      %s92 = ssub.s32 %s16, %s23
      %p93 = scmp.eq.s32.totalorder %s92, 0
      %s95 = sadd.s32 %s94, 1
      %s96 = scalar_select %p93, %s94, %s95
      %p99 = pneg %p93
      %p100 = scmp.eq.s32.totalorder %s16, 1
      %p101 = por %p99, %p100
      %p102 = scmp.ne.s32.totalorder %s94, %s97
      %p103 = scmp.eq.s32.totalorder %s16, 0
      %p104 = por %p102, %p103
      %p105 = scmp.ne.s32.totalorder %s94, %s97
      %p106 = scmp.eq.s32.totalorder %s21, 1
      %p107 = por %p105, %p106
      %p108 = scmp.ne.s32.totalorder %s97, %s98
      %p109 = scmp.eq.s32.totalorder %s21, 0
      %p110 = por %p108, %p109
      %p111 = scmp.ne.s32.totalorder %s97, %s98
      %p112 = scmp.eq.s32.totalorder %s22, 1
      %p113 = por %p111, %p112
      %p115 = scmp.ne.s32.totalorder %s98, %s114
      %p116 = scmp.eq.s32.totalorder %s22, 0
      %p117 = por %p115, %p116
      %p118 = scmp.le.s32.totalorder 1, %s16
      %p119 = scmp.lt.s32.totalorder %s16, 3
      %p120 = pnand %p118, %p119
      %p121 = pneg %p120
      // Predicated region
      $region9: #{tpu_custom_call.1} parent=5 // pred_check
        _
      $region10: #{tpu_custom_call.1} parent=5 // pred_check_branch
        %123 = sbr.rel (%p120) target = $region12
      $region11: #{tpu_custom_call.1} parent=5 // pred_region
        %s124 = ssub.s32 %s16, 1
        // Predicated region
        $region13: #{tpu_custom_call.1} parent=11 // pred_check
          %p125 = pneg %p63
        $region14: #{tpu_custom_call.1} parent=11 // pred_check_branch
          %127 = sbr.rel (%p125) target = $region16
        $region15: #{tpu_custom_call.1} parent=11 // pred_region
          %129 = vsyncadd [#allocation6], 0
          %s130 = sshll.u32 %s1, 4
          %s131 = int_to_ptr.hbm [resolvable:$true] %s130
          %s132 = sshll.u32 [#allocation5], 4
          %s133 = int_to_ptr.vmem [resolvable:$true] %s132
          %138 = dma.hbm_to_vmem [thread:$0]  %s131, 512, %s133, [#allocation6], 128, 128, 8
        $region16: #{tpu_custom_call.1} parent=11 // pred_fallthru
          _
        // Predicated region
        $region17: #{tpu_custom_call.1} parent=11 // pred_check
          %p139 = pneg %p84
        $region18: #{tpu_custom_call.1} parent=11 // pred_check_branch
          %141 = sbr.rel (%p139) target = $region20
        $region19: #{tpu_custom_call.1} parent=11 // pred_region
          %143 = vsyncadd [#allocation6], 0
          %s144 = sshll.u32 %s2, 4
          %s145 = int_to_ptr.hbm [resolvable:$true] %s144
          %s146 = sshll.u32 [#allocation7], 4
          %s147 = int_to_ptr.vmem [resolvable:$true] %s146
          %152 = dma.hbm_to_vmem [thread:$0]  %s145, 512, %s147, [#allocation6], 128, 128, 8
        $region20: #{tpu_custom_call.1} parent=11 // pred_fallthru
          _
      $region12: #{tpu_custom_call.1} parent=5 // pred_fallthru
        _
      %p153 = scmp.lt.s32.totalorder %s16, 2
      // Predicated region
      $region21: #{tpu_custom_call.1} parent=5 // pred_check
        %p154 = pneg %p153
      $region22: #{tpu_custom_call.1} parent=5 // pred_check_branch
        %156 = sbr.rel (%p154) target = $region24
      $region23: #{tpu_custom_call.1} parent=5 // pred_region
        // Predicated region
        $region25: #{tpu_custom_call.1} parent=23 // pred_check
          %p157 = pneg %p36
        $region26: #{tpu_custom_call.1} parent=23 // pred_check_branch
          %159 = sbr.rel (%p157) target = $region28
        $region27: #{tpu_custom_call.1} parent=23 // pred_region
          %s160 = sand.u32 %s26, 1
          %s161 = scalar_lea.sflag [#allocation3], %s160
          %s162 = sand.u32 %s26, 1
          %s163 = smul.addr %s162, 8
          %s164 = scalar_lea.vmem [#allocation2], %s163
          %166 = vsyncadd %s161, 0
          %s167 = smul.addr %s16, 8
          %s168 = scalar_lea.hbm %s0, %s167
          %s170 = sshll.u32 %s168, 4
          %s171 = int_to_ptr.hbm [resolvable:$true] %s170
          %s172 = sshll.u32 %s164, 4
          %s173 = int_to_ptr.vmem [resolvable:$true] %s172
          %175 = dma.hbm_to_vmem [thread:$0]  %s171, 128, %s173, %s161
        $region28: #{tpu_custom_call.1} parent=23 // pred_fallthru
          _
      $region24: #{tpu_custom_call.1} parent=5 // pred_fallthru
        _
      %p176 = scmp.le.s32.totalorder 1, %s16
      %p177 = scmp.lt.s32.totalorder %s16, 3
      %p178 = pnand %p176, %p177
      %p179 = pneg %p178
      // Predicated region
      $region29: #{tpu_custom_call.1} parent=5 // pred_check
        _
      $region30: #{tpu_custom_call.1} parent=5 // pred_check_branch
        %181 = sbr.rel (%p178) target = $region32
      $region31: #{tpu_custom_call.1} parent=5 // pred_region
        %s182 = ssub.s32 %s16, 1
        %s183 = sand.u32 %s29, 1
        %s184 = scalar_lea.sflag [#allocation3], %s183
        %s185 = sand.u32 %s29, 1
        %s186 = smul.addr %s185, 8
        %s187 = scalar_lea.vmem [#allocation2], %s186
        // Predicated region
        $region33: #{tpu_custom_call.1} parent=31 // pred_check
          %p188 = pneg %p42
        $region34: #{tpu_custom_call.1} parent=31 // pred_check_branch
          %190 = sbr.rel (%p188) target = $region36
        $region35: #{tpu_custom_call.1} parent=31 // pred_region
          %192 = dma.done %s184, 128
        $region36: #{tpu_custom_call.1} parent=31 // pred_fallthru
          _
        // Predicated region
        $region37: #{tpu_custom_call.1} parent=31 // pred_check
          %p193 = pneg %p63
        $region38: #{tpu_custom_call.1} parent=31 // pred_check_branch
          %195 = sbr.rel (%p193) target = $region40
        $region39: #{tpu_custom_call.1} parent=31 // pred_region
          %197 = dma.done [#allocation6], 512
        $region40: #{tpu_custom_call.1} parent=31 // pred_fallthru
          _
        // Predicated region
        $region41: #{tpu_custom_call.1} parent=31 // pred_check
          %p198 = pneg %p84
        $region42: #{tpu_custom_call.1} parent=31 // pred_check_branch
          %200 = sbr.rel (%p198) target = $region44
        $region43: #{tpu_custom_call.1} parent=31 // pred_region
          %202 = dma.done [#allocation6], 512
        $region44: #{tpu_custom_call.1} parent=31 // pred_fallthru
          _
        %s203 = sand.u32 %s29, 1
        %s204 = scalar_lea.sflag [#allocation3], %s203
        %s205 = sand.u32 %s29, 1
        %s206 = smul.addr %s205, 8
        %s207 = scalar_lea.vmem [#allocation2], %s206
        %p208 = pneg %p42
        %p209 = pneg %p39
        %p210 = pneg %p63
        %p211 = pneg %p60
        %p212 = pneg %p84
        %p213 = pneg %p81
        %p214 = pneg %p110
        %p215 = pneg %p107
        %s216 = sand.u32 %s97, 1
        %s217 = scalar_lea.sflag [#allocation4], %s216
        %s218 = sand.u32 %s97, 1
        %s219 = smul.addr %s218, 8
        %s220 = scalar_lea.vmem [#allocation8], %s219
        %v221 = vld [vmem:[%s187] sm:$0xff]
        %v222 = vld [vmem:[#allocation5] sm:$0xff]
        %v223 = vld [vmem:[#allocation5 + $0x8] sm:$0xff]
        %v224 = vld [vmem:[#allocation5 + $0x10] sm:$0xff]
        %v225 = vld [vmem:[#allocation5 + $0x18] sm:$0xff]
        %v226 = vld [vmem:[#allocation7] sm:$0xff]
        %v227 = vld [vmem:[#allocation7 + $0x8] sm:$0xff]
        %v228 = vld [vmem:[#allocation7 + $0x10] sm:$0xff]
        %v229 = vld [vmem:[#allocation7 + $0x18] sm:$0xff]
        %vm230 = vcmask 261120
        %v232 = vsel %vm230, %v221, 0
        %234 = vmatpush.msra.mxu0 0.0
        %235 = vmatpush.msra.mxu0 0.0
        %236 = vmatpush.msra.mxu0 0.0
        %237 = vmatpush.msra.mxu0 0.0
        %238 = vmatpush.msra.mxu0 0.0
        %239 = vmatpush.msra.mxu0 0.0
        %240 = vmatpush.msra.mxu0 0.0
        %241 = vmatpush.msra.mxu0 0.0
        %242 = vmatpush.msra.mxu0 0.0
        %243 = vmatpush.msra.mxu0 0.0
        %244 = vmatpush.msra.mxu0 0.0
        %245 = vmatpush.msra.mxu0 0.0
        %246 = vmatpush.msra.mxu0 %v225
        %247 = vmatpush.msra.mxu0 %v224
        %248 = vmatpush.msra.mxu0 %v223
        %249 = vmatpush.msra.mxu0 %v222
        %250 = vmatmul.f32.gmra.mxu0 %v232
        %v251 = vpop.f32.mrf.mxu0
        %v252 = vadd.f32 0.0, %v251
        %253 = vdwg.mxu0
        %255 = vrot.lane.b32.xlu0 %v252, 120
        %v256 = vpop.permute.xlu0 %255
        %257 = vrot.lane.b32.xlu0 %v252, 112
        %v258 = vpop.permute.xlu0 %257
        %259 = vrot.lane.b32.xlu0 %v252, 104
        %v260 = vpop.permute.xlu0 %259
        %261 = vrot.lane.b32.xlu0 %v252, 96
        %v262 = vpop.permute.xlu0 %261
        %vm263 = vcmask 64512
        %v264 = vsel %vm263, %v252, 0
        %v266 = vsel %vm263, %v262, 0
        %268 = vmatpush.xpose.msra.mxu0 0.0
        %269 = vmatpush.xpose.msra.mxu0 0.0
        %270 = vmatpush.xpose.msra.mxu0 0.0
        %271 = vmatpush.xpose.msra.mxu0 0.0
        %272 = vmatpush.xpose.msra.mxu0 0.0
        %273 = vmatpush.xpose.msra.mxu0 0.0
        %274 = vmatpush.xpose.msra.mxu0 0.0
        %275 = vmatpush.xpose.msra.mxu0 0.0
        %276 = vmatpush.xpose.msra.mxu0 0.0
        %277 = vmatpush.xpose.msra.mxu0 0.0
        %278 = vmatpush.xpose.msra.mxu0 0.0
        %279 = vmatpush.xpose.msra.mxu0 0.0
        %280 = vmatpush.xpose.msra.mxu0 0.0
        %281 = vmatpush.xpose.msra.mxu0 0.0
        %282 = vmatpush.xpose.msra.mxu0 0.0
        %283 = vmatpush.xpose.msra.mxu0 %v266
        %284 = vmatmul.f32.gmra.mxu0 %v264
        %v285 = vpop.f32.mrf.mxu0
        %v286 = vadd.f32 0.0, %v285
        %287 = vdwg.mxu0
        %288 = vrot.lane.b32.xlu0 %v256, 96
        %v289 = vpop.permute.xlu0 %288
        %v290 = vsel %vm263, %v256, 0
        %v292 = vsel %vm263, %v289, 0
        %294 = vmatpush.xpose.msra.mxu0 0.0
        %295 = vmatpush.xpose.msra.mxu0 0.0
        %296 = vmatpush.xpose.msra.mxu0 0.0
        %297 = vmatpush.xpose.msra.mxu0 0.0
        %298 = vmatpush.xpose.msra.mxu0 0.0
        %299 = vmatpush.xpose.msra.mxu0 0.0
        %300 = vmatpush.xpose.msra.mxu0 0.0
        %301 = vmatpush.xpose.msra.mxu0 0.0
        %302 = vmatpush.xpose.msra.mxu0 0.0
        %303 = vmatpush.xpose.msra.mxu0 0.0
        %304 = vmatpush.xpose.msra.mxu0 0.0
        %305 = vmatpush.xpose.msra.mxu0 0.0
        %306 = vmatpush.xpose.msra.mxu0 0.0
        %307 = vmatpush.xpose.msra.mxu0 0.0
        %308 = vmatpush.xpose.msra.mxu0 0.0
        %309 = vmatpush.xpose.msra.mxu0 %v292
        %310 = vmatmul.f32.gmra.mxu0 %v290
        %v311 = vpop.f32.mrf.mxu0
        %v312 = vadd.f32 0.0, %v311
        %313 = vdwg.mxu0
        %314 = vrot.lane.b32.xlu0 %v258, 96
        %v315 = vpop.permute.xlu0 %314
        %v316 = vsel %vm263, %v258, 0
        %v318 = vsel %vm263, %v315, 0
        %320 = vmatpush.xpose.msra.mxu0 0.0
        %321 = vmatpush.xpose.msra.mxu0 0.0
        %322 = vmatpush.xpose.msra.mxu0 0.0
        %323 = vmatpush.xpose.msra.mxu0 0.0
        %324 = vmatpush.xpose.msra.mxu0 0.0
        %325 = vmatpush.xpose.msra.mxu0 0.0
        %326 = vmatpush.xpose.msra.mxu0 0.0
        %327 = vmatpush.xpose.msra.mxu0 0.0
        %328 = vmatpush.xpose.msra.mxu0 0.0
        %329 = vmatpush.xpose.msra.mxu0 0.0
        %330 = vmatpush.xpose.msra.mxu0 0.0
        %331 = vmatpush.xpose.msra.mxu0 0.0
        %332 = vmatpush.xpose.msra.mxu0 0.0
        %333 = vmatpush.xpose.msra.mxu0 0.0
        %334 = vmatpush.xpose.msra.mxu0 0.0
        %335 = vmatpush.xpose.msra.mxu0 %v318
        %336 = vmatmul.f32.gmra.mxu0 %v316
        %v337 = vpop.f32.mrf.mxu0
        %v338 = vadd.f32 0.0, %v337
        %339 = vdwg.mxu0
        %340 = vrot.lane.b32.xlu0 %v260, 96
        %v341 = vpop.permute.xlu0 %340
        %v342 = vsel %vm263, %v260, 0
        %v344 = vsel %vm263, %v341, 0
        %346 = vmatpush.xpose.msra.mxu0 0.0
        %347 = vmatpush.xpose.msra.mxu0 0.0
        %348 = vmatpush.xpose.msra.mxu0 0.0
        %349 = vmatpush.xpose.msra.mxu0 0.0
        %350 = vmatpush.xpose.msra.mxu0 0.0
        %351 = vmatpush.xpose.msra.mxu0 0.0
        %352 = vmatpush.xpose.msra.mxu0 0.0
        %353 = vmatpush.xpose.msra.mxu0 0.0
        %354 = vmatpush.xpose.msra.mxu0 0.0
        %355 = vmatpush.xpose.msra.mxu0 0.0
        %356 = vmatpush.xpose.msra.mxu0 0.0
        %357 = vmatpush.xpose.msra.mxu0 0.0
        %358 = vmatpush.xpose.msra.mxu0 0.0
        %359 = vmatpush.xpose.msra.mxu0 0.0
        %360 = vmatpush.xpose.msra.mxu0 0.0
        %361 = vmatpush.xpose.msra.mxu0 %v344
        %362 = vmatmul.f32.gmra.mxu0 %v342
        %v363 = vpop.f32.mrf.mxu0
        %v364 = vadd.f32 0.0, %v363
        %365 = vdwg.mxu0
        %v366 = vmul.f32 %v286, 0.35355338
        %v367 = vmul.f32 %v312, 0.35355338
        %v368 = vmul.f32 %v338, 0.35355338
        %v369 = vmul.f32 %v364, 0.35355338
        %v370 = vsel %vm263, %v366, -inf
        %371 = vmax.xlane.f32.xlu0 %v370
        %v372 = vpop.xlane.xlu0 %371
        %v373 = vsel %vm263, %v367, -inf
        %374 = vmax.xlane.f32.xlu0 %v373
        %v375 = vpop.xlane.xlu0 %374
        %v376 = vsel %vm263, %v368, -inf
        %377 = vmax.xlane.f32.xlu0 %v376
        %v378 = vpop.xlane.xlu0 %377
        %v379 = vsel %vm263, %v369, -inf
        %380 = vmax.xlane.f32.xlu0 %v379
        %v381 = vpop.xlane.xlu0 %380
        %v382 = vsub.f32 %v366, %v372
        %v383 = vsub.f32 %v367, %v375
        %v384 = vsub.f32 %v368, %v378
        %v385 = vsub.f32 %v369, %v381
        %v386 = vmul.f32 %v382, 1.442695
        %v387 = vpow.pop %v386
        %v388 = vmul.f32 %v383, 1.442695
        %v389 = vpow.pop %v388
        %v390 = vmul.f32 %v384, 1.442695
        %v391 = vpow.pop %v390
        %v392 = vmul.f32 %v385, 1.442695
        %v393 = vpow.pop %v392
        %v394 = vsel %vm263, %v387, 0.0
        %395 = vadd.xlane.f32.xlu0 %v394
        %v396 = vpop.xlane.xlu0 %395
        %v397 = vsel %vm263, %v389, 0.0
        %398 = vadd.xlane.f32.xlu0 %v397
        %v399 = vpop.xlane.xlu0 %398
        %v400 = vsel %vm263, %v391, 0.0
        %401 = vadd.xlane.f32.xlu0 %v400
        %v402 = vpop.xlane.xlu0 %401
        %v403 = vsel %vm263, %v393, 0.0
        %404 = vadd.xlane.f32.xlu0 %v403
        %v405 = vpop.xlane.xlu0 %404
        %v406 = vrcp.pop %v396
        %v407 = vmul.f32 %v396, %v406
        %v408 = vsub.f32 1.0, %v407
        %v409 = vmul.f32 %v406, %v408
        %v410 = vadd.f32 %v406, %v409
        %vm411 = vweird.f32 %v396
        %vm412 = vweird.f32 %v406
        %vm413 = vmor %vm411, %vm412
        %v414 = vsel %vm413, %v406, %v410
        %v415 = vand.u32 2147483647, %v396
        %vm416 = vcmp.eq.f32.partialorder %v415, 8.507059e+37
        %v417 = vand.u32 %v396, 2147483648
        %v418 = vor.u32 1.1754944e-38, %v417
        %v419 = vsel %vm416, %v418, %v414
        %v420 = vrcp.pop %v399
        %v421 = vmul.f32 %v399, %v420
        %v422 = vsub.f32 1.0, %v421
        %v423 = vmul.f32 %v420, %v422
        %v424 = vadd.f32 %v420, %v423
        %vm425 = vweird.f32 %v399
        %vm426 = vweird.f32 %v420
        %vm427 = vmor %vm425, %vm426
        %v428 = vsel %vm427, %v420, %v424
        %v429 = vand.u32 2147483647, %v399
        %vm430 = vcmp.eq.f32.partialorder %v429, 8.507059e+37
        %v431 = vand.u32 %v399, 2147483648
        %v432 = vor.u32 1.1754944e-38, %v431
        %v433 = vsel %vm430, %v432, %v428
        %v434 = vrcp.pop %v402
        %v435 = vmul.f32 %v402, %v434
        %v436 = vsub.f32 1.0, %v435
        %v437 = vmul.f32 %v434, %v436
        %v438 = vadd.f32 %v434, %v437
        %vm439 = vweird.f32 %v402
        %vm440 = vweird.f32 %v434
        %vm441 = vmor %vm439, %vm440
        %v442 = vsel %vm441, %v434, %v438
        %v443 = vand.u32 2147483647, %v402
        %vm444 = vcmp.eq.f32.partialorder %v443, 8.507059e+37
        %v445 = vand.u32 %v402, 2147483648
        %v446 = vor.u32 1.1754944e-38, %v445
        %v447 = vsel %vm444, %v446, %v442
        %v448 = vrcp.pop %v405
        %v449 = vmul.f32 %v405, %v448
        %v450 = vsub.f32 1.0, %v449
        %v451 = vmul.f32 %v448, %v450
        %v452 = vadd.f32 %v448, %v451
        %vm453 = vweird.f32 %v405
        %vm454 = vweird.f32 %v448
        %vm455 = vmor %vm453, %vm454
        %v456 = vsel %vm455, %v448, %v452
        %v457 = vand.u32 2147483647, %v405
        %vm458 = vcmp.eq.f32.partialorder %v457, 8.507059e+37
        %v459 = vand.u32 %v405, 2147483648
        %v460 = vor.u32 1.1754944e-38, %v459
        %v461 = vsel %vm458, %v460, %v456
        %v462 = vmul.f32 %v387, %v419
        %v463 = vmul.f32 %v389, %v433
        %v464 = vmul.f32 %v391, %v447
        %v465 = vmul.f32 %v393, %v461
        %466 = vrot.lane.b32.xlu0 %v252, 64
        %v467 = vpop.permute.xlu0 %466
        %v470 = vsel %vm263, %v462, 0
        %472 = vmatpush.msra.mxu0 0.0
        %473 = vmatpush.msra.mxu0 0.0
        %474 = vmatpush.msra.mxu0 0.0
        %475 = vmatpush.msra.mxu0 0.0
        %476 = vmatpush.msra.mxu0 0.0
        %477 = vmatpush.msra.mxu0 0.0
        %478 = vmatpush.msra.mxu0 0.0
        %479 = vmatpush.msra.mxu0 0.0
        %480 = vmatpush.msra.mxu0 0.0
        %481 = vmatpush.msra.mxu0 0.0
        %482 = vmatpush.msra.mxu0 0.0
        %483 = vmatpush.msra.mxu0 0.0
        %484 = vmatpush.msra.mxu0 0.0
        %485 = vmatpush.msra.mxu0 0.0
        %486 = vmatpush.msra.mxu0 0.0
        %487 = vmatpush.msra.mxu0 %v467
        %488 = vmatmul.f32.gmra.mxu0 %v470
        %v489 = vpop.f32.mrf.mxu0
        %v490 = vadd.f32 0.0, %v489
        %491 = vdwg.mxu0
        %492 = vrot.lane.b32.xlu0 %v256, 64
        %v493 = vpop.permute.xlu0 %492
        %v496 = vsel %vm263, %v463, 0
        %498 = vmatpush.msra.mxu0 0.0
        %499 = vmatpush.msra.mxu0 0.0
        %500 = vmatpush.msra.mxu0 0.0
        %501 = vmatpush.msra.mxu0 0.0
        %502 = vmatpush.msra.mxu0 0.0
        %503 = vmatpush.msra.mxu0 0.0
        %504 = vmatpush.msra.mxu0 0.0
        %505 = vmatpush.msra.mxu0 0.0
        %506 = vmatpush.msra.mxu0 0.0
        %507 = vmatpush.msra.mxu0 0.0
        %508 = vmatpush.msra.mxu0 0.0
        %509 = vmatpush.msra.mxu0 0.0
        %510 = vmatpush.msra.mxu0 0.0
        %511 = vmatpush.msra.mxu0 0.0
        %512 = vmatpush.msra.mxu0 0.0
        %513 = vmatpush.msra.mxu0 %v493
        %514 = vmatmul.f32.gmra.mxu0 %v496
        %v515 = vpop.f32.mrf.mxu0
        %v516 = vadd.f32 0.0, %v515
        %517 = vdwg.mxu0
        %518 = vrot.lane.b32.xlu0 %v258, 64
        %v519 = vpop.permute.xlu0 %518
        %v522 = vsel %vm263, %v464, 0
        %524 = vmatpush.msra.mxu0 0.0
        %525 = vmatpush.msra.mxu0 0.0
        %526 = vmatpush.msra.mxu0 0.0
        %527 = vmatpush.msra.mxu0 0.0
        %528 = vmatpush.msra.mxu0 0.0
        %529 = vmatpush.msra.mxu0 0.0
        %530 = vmatpush.msra.mxu0 0.0
        %531 = vmatpush.msra.mxu0 0.0
        %532 = vmatpush.msra.mxu0 0.0
        %533 = vmatpush.msra.mxu0 0.0
        %534 = vmatpush.msra.mxu0 0.0
        %535 = vmatpush.msra.mxu0 0.0
        %536 = vmatpush.msra.mxu0 0.0
        %537 = vmatpush.msra.mxu0 0.0
        %538 = vmatpush.msra.mxu0 0.0
        %539 = vmatpush.msra.mxu0 %v519
        %540 = vmatmul.f32.gmra.mxu0 %v522
        %v541 = vpop.f32.mrf.mxu0
        %v542 = vadd.f32 0.0, %v541
        %543 = vdwg.mxu0
        %544 = vrot.lane.b32.xlu0 %v260, 64
        %v545 = vpop.permute.xlu0 %544
        %v548 = vsel %vm263, %v465, 0
        %550 = vmatpush.msra.mxu0 0.0
        %551 = vmatpush.msra.mxu0 0.0
        %552 = vmatpush.msra.mxu0 0.0
        %553 = vmatpush.msra.mxu0 0.0
        %554 = vmatpush.msra.mxu0 0.0
        %555 = vmatpush.msra.mxu0 0.0
        %556 = vmatpush.msra.mxu0 0.0
        %557 = vmatpush.msra.mxu0 0.0
        %558 = vmatpush.msra.mxu0 0.0
        %559 = vmatpush.msra.mxu0 0.0
        %560 = vmatpush.msra.mxu0 0.0
        %561 = vmatpush.msra.mxu0 0.0
        %562 = vmatpush.msra.mxu0 0.0
        %563 = vmatpush.msra.mxu0 0.0
        %564 = vmatpush.msra.mxu0 0.0
        %565 = vmatpush.msra.mxu0 %v545
        %566 = vmatmul.f32.gmra.mxu0 %v548
        %v567 = vpop.f32.mrf.mxu0
        %v568 = vadd.f32 0.0, %v567
        %569 = vdwg.mxu0
        %571 = vrot.lane.b32.xlu0 %v516, 8
        %v572 = vpop.permute.xlu0 %571
        %575 = vrot.lane.b32.xlu0 %v542, 16
        %v576 = vpop.permute.xlu0 %575
        %579 = vrot.lane.b32.xlu0 %v568, 24
        %v580 = vpop.permute.xlu0 %579
        %v582 = vsel %vm263, %v490, %v572
        %vm583 = vcmask 130048
        %v584 = vsel %vm583, %v582, %v576
        %vm585 = vcmask 195584
        %v586 = vsel %vm585, %v584, %v580
        %v588 = vsel %vm230, %v586, 0
        %590 = vmatpush.msra.mxu0 0.0
        %591 = vmatpush.msra.mxu0 0.0
        %592 = vmatpush.msra.mxu0 0.0
        %593 = vmatpush.msra.mxu0 0.0
        %594 = vmatpush.msra.mxu0 0.0
        %595 = vmatpush.msra.mxu0 0.0
        %596 = vmatpush.msra.mxu0 0.0
        %597 = vmatpush.msra.mxu0 0.0
        %598 = vmatpush.msra.mxu0 0.0
        %599 = vmatpush.msra.mxu0 0.0
        %600 = vmatpush.msra.mxu0 0.0
        %601 = vmatpush.msra.mxu0 0.0
        %602 = vmatpush.msra.mxu0 %v229
        %603 = vmatpush.msra.mxu0 %v228
        %604 = vmatpush.msra.mxu0 %v227
        %605 = vmatpush.msra.mxu0 %v226
        %606 = vmatmul.f32.gmra.mxu0 %v588
        %v607 = vpop.f32.mrf.mxu0
        %v608 = vadd.f32 0.0, %v607
        %609 = vdwg.mxu0
        %610 = vst.msk [vmem:[%s220] sm:$0xff] %vm230, %v608
        %s611 = sand.u32 %s97, 1
        %s612 = scalar_lea.sflag [#allocation4], %s611
        %s613 = sand.u32 %s97, 1
        %s614 = smul.addr %s613, 8
        %s615 = scalar_lea.vmem [#allocation8], %s614
        // Predicated region
        $region45: #{tpu_custom_call.1} parent=31 // pred_check
          %p616 = pneg %p107
        $region46: #{tpu_custom_call.1} parent=31 // pred_check_branch
          %618 = sbr.rel (%p616) target = $region48
        $region47: #{tpu_custom_call.1} parent=31 // pred_region
          %620 = vsyncadd %s612, 0
          %s621 = smul.addr %s21, 8
          %s622 = scalar_lea.hbm %s3, %s621
          %s624 = sshll.u32 %s615, 4
          %s625 = int_to_ptr.vmem [resolvable:$true] %s624
          %s626 = sshll.u32 %s622, 4
          %s627 = int_to_ptr.hbm [resolvable:$true] %s626
          %629 = dma.vmem_to_hbm [thread:$0]  %s625, 128, %s627, %s612
        $region48: #{tpu_custom_call.1} parent=31 // pred_fallthru
          _
      $region32: #{tpu_custom_call.1} parent=5 // pred_fallthru
        _
      %p630 = scmp.le.s32.totalorder 2, %s16
      // Predicated region
      $region49: #{tpu_custom_call.1} parent=5 // pred_check
        %p631 = pneg %p630
      $region50: #{tpu_custom_call.1} parent=5 // pred_check_branch
        %633 = sbr.rel (%p631) target = $region52
      $region51: #{tpu_custom_call.1} parent=5 // pred_region
        %s634 = ssub.s32 %s16, 2
        // Predicated region
        $region53: #{tpu_custom_call.1} parent=51 // pred_check
          %p635 = pneg %p113
        $region54: #{tpu_custom_call.1} parent=51 // pred_check_branch
          %637 = sbr.rel (%p635) target = $region56
        $region55: #{tpu_custom_call.1} parent=51 // pred_region
          %s638 = sand.u32 %s98, 1
          %s639 = scalar_lea.sflag [#allocation4], %s638
          %s640 = sand.u32 %s98, 1
          %s641 = smul.addr %s640, 8
          %s642 = scalar_lea.vmem [#allocation8], %s641
          %644 = dma.done %s639, 128
        $region56: #{tpu_custom_call.1} parent=51 // pred_fallthru
          _
      $region52: #{tpu_custom_call.1} parent=5 // pred_fallthru
        _
    $region6: #{tpu_custom_call.1} parent=1 // loop_footer
      %s20 = sadd.s32 1, %s16
    $region7: #{tpu_custom_call.1} parent=1 // loop_footer_branch
      %15 = sbr.rel target = $region3
    $region8: #{tpu_custom_call.1} parent=1 // loop_exit
      _
    %645 = vsyncpa [#allocation3], 1
    %s646 = scalar_lea.sflag [#allocation3], 1
    %647 = vsyncpa %s646, 1
    %648 = vsyncpa [#allocation6], 1
    %649 = vsyncpa [#allocation4], 1
    %s650 = scalar_lea.sflag [#allocation4], 1
    %651 = vsyncpa %s650, 1

</llo_original>
